<compile_context>
chip_gen: v7x
topology: tpu7x:2x2x1
jax: 0.10.0
libtpu: 0.0.40
codegen_flags: <defaults>
</compile_context>

<pallas_src>
import math

import jax
import jax.numpy as jnp
from jax.experimental import pallas as pl
from jax.experimental.pallas import tpu as pltpu


def mlp_kernel(x_ref,
               w1_ref, b1_ref,
               w2_ref, b2_ref,
               w3_ref, b3_ref,
               w4_ref, b4_ref,
               o_ref):
    """Fused 4-layer MLP forward on one batch tile. bf16 operands, f32 accumulation."""
    x = x_ref[...]
    cdt = x.dtype  # compute dtype (bf16)

    # Layer 1: Linear(input_size, 30) + ReLU
    h = jnp.dot(x, w1_ref[...], preferred_element_type=jnp.float32) + b1_ref[...]
    h = jnp.maximum(h, 0.0).astype(cdt)

    # Layer 2: Linear(30, 30) + ReLU
    h = jnp.dot(h, w2_ref[...], preferred_element_type=jnp.float32) + b2_ref[...]
    h = jnp.maximum(h, 0.0).astype(cdt)

    # Layer 3: Linear(30, 30) + ReLU
    h = jnp.dot(h, w3_ref[...], preferred_element_type=jnp.float32) + b3_ref[...]
    h = jnp.maximum(h, 0.0).astype(cdt)

    # Layer 4: Linear(30, 6) + Sigmoid (reciprocal on the EUP slot)
    z = jnp.dot(h, w4_ref[...], preferred_element_type=jnp.float32) + b4_ref[...]
    o_ref[...] = pl.reciprocal(1.0 + jnp.exp(-z), approx=True).astype(o_ref.dtype)


def mlp_forward(x, params, *, block_b=512, compute_dtype=jnp.bfloat16):
    """x: (B, input_size) f32. params: list of (W_t, b_row), W_t (in, out), b_row (1, out)."""
    B, in_dim = x.shape
    (w1, b1), (w2, b2), (w3, b3), (w4, b4) = params
    out_dim = w4.shape[1]

    # Batch tile: full batch if small, else a VMEM-safe tile (fits all of v5e/v6e/v7x budgets).
    tb = B if B <= block_b else block_b
    grid = (pl.cdiv(B, tb),)

    # Cast operands once (not per layer): bf16 MXU path with f32 accumulation in-kernel.
    xc = x.astype(compute_dtype)
    ws = [w.astype(compute_dtype) for w in (w1, w2, w3, w4)]
    bs = [b.astype(jnp.float32) for b in (b1, b2, b3, b4)]

    def resident(shape):
        # Weights/biases: same block every grid step -> stay resident in VMEM (no re-DMA).
        return pl.BlockSpec(shape, lambda i: (0, 0))

    in_specs = [
        pl.BlockSpec((tb, in_dim), lambda i: (i, 0)),   # x: tiled over batch
        resident(ws[0].shape), resident(bs[0].shape),
        resident(ws[1].shape), resident(bs[1].shape),
        resident(ws[2].shape), resident(bs[2].shape),
        resident(ws[3].shape), resident(bs[3].shape),
    ]

    y = pl.pallas_call(
        mlp_kernel,
        out_shape=jax.ShapeDtypeStruct((B, out_dim), jnp.float32),
        grid=grid,
        in_specs=in_specs,
        out_specs=pl.BlockSpec((tb, out_dim), lambda i: (i, 0)),
        compiler_params=pltpu.CompilerParams(
            # Batch tiles are independent -> shard across both TensorCores on v7x.
            dimension_semantics=("parallel",),
        ),
    )(xc, ws[0], bs[0], ws[1], bs[1], ws[2], bs[2], ws[3], bs[3])

    # .squeeze() semantics from the PyTorch module (drops any size-1 dims).
    return jnp.squeeze(y)


def init_linear(key, in_features, out_features):
    """Deterministic init mimicking torch.nn.Linear default (uniform +-1/sqrt(in))."""
    kw, kb = jax.random.split(key)
    bound = 1.0 / math.sqrt(in_features)
    # Stored already transposed: (in, out). Bias kept 2D (1, out) for TPU-friendly broadcast.
    w_t = jax.random.uniform(kw, (in_features, out_features), jnp.float32, -bound, bound)
    b = jax.random.uniform(kb, (1, out_features), jnp.float32, -bound, bound)
    return w_t, b


def reference_forward(x, params):
    h = x
    for i, (w, b) in enumerate(params):
        h = h @ w + b
        if i < 3:
            h = jnp.maximum(h, 0.0)
        else:
            h = jax.nn.sigmoid(h)
    return jnp.squeeze(h)


if __name__ == "__main__":
    key = jax.random.PRNGKey(0)
    batch = 8
    input_size = 16

    k_x, k1, k2, k3, k4 = jax.random.split(key, 5)
    x = jax.random.normal(k_x, (batch, input_size), jnp.float32)

    params = [
        init_linear(k1, input_size, 30),
        init_linear(k2, 30, 30),
        init_linear(k3, 30, 30),
        init_linear(k4, 30, 6),
    ]

    out = mlp_forward(x, params)
    out = jax.block_until_ready(out)

    ref = reference_forward(x, params)  # f32 reference
    assert out.shape == (batch, 6), out.shape
    # bf16 operands + approx reciprocal -> loosened tolerance vs the f32 reference.
    assert jnp.allclose(out, ref, atol=3e-2, rtol=3e-2), "mismatch vs reference"

    print("KERNEL_OK")
</pallas_src>

<mosaic_0001>
module attributes {stable_mosaic.version = 11 : i64} {
  func.func @mlp_kernel(%arg0: i32, %arg1: memref<8x16xbf16, #tpu.memory_space<vmem>>, %arg2: memref<16x30xbf16, #tpu.memory_space<vmem>>, %arg3: memref<1x30xf32, #tpu.memory_space<vmem>>, %arg4: memref<30x30xbf16, #tpu.memory_space<vmem>>, %arg5: memref<1x30xf32, #tpu.memory_space<vmem>>, %arg6: memref<30x30xbf16, #tpu.memory_space<vmem>>, %arg7: memref<1x30xf32, #tpu.memory_space<vmem>>, %arg8: memref<30x6xbf16, #tpu.memory_space<vmem>>, %arg9: memref<1x6xf32, #tpu.memory_space<vmem>>, %arg10: memref<8x6xf32, #tpu.memory_space<vmem>>) attributes {dimension_semantics = [#tpu.dimension_semantics<parallel>], iteration_bounds = array<i64: 1>, scalar_prefetch = 0 : i64, scratch_operands = 0 : i64, tpu.core_type = #tpu.core_type<tc>, window_params = [{transform_indices = @transform_0, window_bounds = array<i64: 8, 16>}, {pipeline_mode = #tpu.pipeline_mode<synchronous>, transform_indices = @transform_1, window_bounds = array<i64: 16, 30>}, {pipeline_mode = #tpu.pipeline_mode<synchronous>, transform_indices = @transform_2, window_bounds = array<i64: 1, 30>}, {pipeline_mode = #tpu.pipeline_mode<synchronous>, transform_indices = @transform_3, window_bounds = array<i64: 30, 30>}, {pipeline_mode = #tpu.pipeline_mode<synchronous>, transform_indices = @transform_4, window_bounds = array<i64: 1, 30>}, {pipeline_mode = #tpu.pipeline_mode<synchronous>, transform_indices = @transform_5, window_bounds = array<i64: 30, 30>}, {pipeline_mode = #tpu.pipeline_mode<synchronous>, transform_indices = @transform_6, window_bounds = array<i64: 1, 30>}, {pipeline_mode = #tpu.pipeline_mode<synchronous>, transform_indices = @transform_7, window_bounds = array<i64: 30, 6>}, {pipeline_mode = #tpu.pipeline_mode<synchronous>, transform_indices = @transform_8, window_bounds = array<i64: 1, 6>}, {transform_indices = @transform_9, window_bounds = array<i64: 8, 6>}]} {
    %c0 = arith.constant 0 : index
    %c0_0 = arith.constant 0 : index
    %0 = vector.load %arg1[%c0, %c0_0] : memref<8x16xbf16, #tpu.memory_space<vmem>>, vector<8x16xbf16>
    %c0_1 = arith.constant 0 : index
    %c0_2 = arith.constant 0 : index
    %1 = vector.load %arg2[%c0_1, %c0_2] : memref<16x30xbf16, #tpu.memory_space<vmem>>, vector<16x30xbf16>
    %cst = arith.constant dense<0.000000e+00> : vector<8x30xf32>
    %2 = tpu.matmul %0, %1, %cst {dimension_numbers = #tpu.dot_dimension_numbers<[1], [0], [0], [1], [0, 0, 1, 1], [], []>} : vector<8x16xbf16>, vector<16x30xbf16>, vector<8x30xf32> -> vector<8x30xf32>
    %c0_3 = arith.constant 0 : index
    %c0_4 = arith.constant 0 : index
    %3 = vector.load %arg3[%c0_3, %c0_4] : memref<1x30xf32, #tpu.memory_space<vmem>>, vector<1x30xf32>
    %4 = vector.broadcast %3 : vector<1x30xf32> to vector<8x30xf32>
    %5 = arith.addf %2, %4 : vector<8x30xf32>
    %cst_5 = arith.constant 0.000000e+00 : f32
    %6 = vector.broadcast %cst_5 : f32 to vector<8x30xf32>
    %7 = arith.maximumf %5, %6 : vector<8x30xf32>
    %8 = arith.truncf %7 : vector<8x30xf32> to vector<8x30xbf16>
    %c0_6 = arith.constant 0 : index
    %c0_7 = arith.constant 0 : index
    %9 = vector.load %arg4[%c0_6, %c0_7] : memref<30x30xbf16, #tpu.memory_space<vmem>>, vector<30x30xbf16>
    %cst_8 = arith.constant dense<0.000000e+00> : vector<8x30xf32>
    %10 = tpu.matmul %8, %9, %cst_8 {dimension_numbers = #tpu.dot_dimension_numbers<[1], [0], [0], [1], [0, 0, 1, 1], [], []>} : vector<8x30xbf16>, vector<30x30xbf16>, vector<8x30xf32> -> vector<8x30xf32>
    %c0_9 = arith.constant 0 : index
    %c0_10 = arith.constant 0 : index
    %11 = vector.load %arg5[%c0_9, %c0_10] : memref<1x30xf32, #tpu.memory_space<vmem>>, vector<1x30xf32>
    %12 = vector.broadcast %11 : vector<1x30xf32> to vector<8x30xf32>
    %13 = arith.addf %10, %12 : vector<8x30xf32>
    %cst_11 = arith.constant 0.000000e+00 : f32
    %14 = vector.broadcast %cst_11 : f32 to vector<8x30xf32>
    %15 = arith.maximumf %13, %14 : vector<8x30xf32>
    %16 = arith.truncf %15 : vector<8x30xf32> to vector<8x30xbf16>
    %c0_12 = arith.constant 0 : index
    %c0_13 = arith.constant 0 : index
    %17 = vector.load %arg6[%c0_12, %c0_13] : memref<30x30xbf16, #tpu.memory_space<vmem>>, vector<30x30xbf16>
    %cst_14 = arith.constant dense<0.000000e+00> : vector<8x30xf32>
    %18 = tpu.matmul %16, %17, %cst_14 {dimension_numbers = #tpu.dot_dimension_numbers<[1], [0], [0], [1], [0, 0, 1, 1], [], []>} : vector<8x30xbf16>, vector<30x30xbf16>, vector<8x30xf32> -> vector<8x30xf32>
    %c0_15 = arith.constant 0 : index
    %c0_16 = arith.constant 0 : index
    %19 = vector.load %arg7[%c0_15, %c0_16] : memref<1x30xf32, #tpu.memory_space<vmem>>, vector<1x30xf32>
    %20 = vector.broadcast %19 : vector<1x30xf32> to vector<8x30xf32>
    %21 = arith.addf %18, %20 : vector<8x30xf32>
    %cst_17 = arith.constant 0.000000e+00 : f32
    %22 = vector.broadcast %cst_17 : f32 to vector<8x30xf32>
    %23 = arith.maximumf %21, %22 : vector<8x30xf32>
    %24 = arith.truncf %23 : vector<8x30xf32> to vector<8x30xbf16>
    %c0_18 = arith.constant 0 : index
    %c0_19 = arith.constant 0 : index
    %25 = vector.load %arg8[%c0_18, %c0_19] : memref<30x6xbf16, #tpu.memory_space<vmem>>, vector<30x6xbf16>
    %cst_20 = arith.constant dense<0.000000e+00> : vector<8x6xf32>
    %26 = tpu.matmul %24, %25, %cst_20 {dimension_numbers = #tpu.dot_dimension_numbers<[1], [0], [0], [1], [0, 0, 1, 1], [], []>} : vector<8x30xbf16>, vector<30x6xbf16>, vector<8x6xf32> -> vector<8x6xf32>
    %c0_21 = arith.constant 0 : index
    %c0_22 = arith.constant 0 : index
    %27 = vector.load %arg9[%c0_21, %c0_22] : memref<1x6xf32, #tpu.memory_space<vmem>>, vector<1x6xf32>
    %28 = vector.broadcast %27 : vector<1x6xf32> to vector<8x6xf32>
    %29 = arith.addf %26, %28 : vector<8x6xf32>
    %cst_23 = arith.constant 0.000000e+00 : f32
    %30 = vector.broadcast %cst_23 : f32 to vector<8x6xf32>
    %31 = arith.subf %30, %29 : vector<8x6xf32>
    %32 = math.exp %31 : vector<8x6xf32>
    %cst_24 = arith.constant 1.000000e+00 : f32
    %33 = vector.broadcast %cst_24 : f32 to vector<8x6xf32>
    %34 = arith.addf %33, %32 : vector<8x6xf32>
    %35 = tpu.reciprocal %34 {approx = true} : vector<8x6xf32> -> vector<8x6xf32>
    %c0_25 = arith.constant 0 : index
    %c0_26 = arith.constant 0 : index
    %36 = vector.load %arg10[%c0_25, %c0_26] : memref<8x6xf32, #tpu.memory_space<vmem>>, vector<8x6xf32>
    tpu.vector_store %arg10[%c0_25, %c0_26], %35 {strides = array<i32>} : memref<8x6xf32, #tpu.memory_space<vmem>>, vector<8x6xf32>,
    return
  }
  func.func @transform_0(%arg0: i32) -> (i32, i32) {
    %c0_i32 = arith.constant 0 : i32
    %c0_i32_0 = arith.constant 0 : i32
    return %arg0, %c0_i32 : i32, i32
  }
  func.func @transform_1(%arg0: i32) -> (i32, i32) {
    %c0_i32 = arith.constant 0 : i32
    %c0_i32_0 = arith.constant 0 : i32
    %c0_i32_1 = arith.constant 0 : i32
    return %c0_i32, %c0_i32_0 : i32, i32
  }
  func.func @transform_2(%arg0: i32) -> (i32, i32) {
    %c0_i32 = arith.constant 0 : i32
    %c0_i32_0 = arith.constant 0 : i32
    %c0_i32_1 = arith.constant 0 : i32
    return %c0_i32, %c0_i32_0 : i32, i32
  }
  func.func @transform_3(%arg0: i32) -> (i32, i32) {
    %c0_i32 = arith.constant 0 : i32
    %c0_i32_0 = arith.constant 0 : i32
    %c0_i32_1 = arith.constant 0 : i32
    return %c0_i32, %c0_i32_0 : i32, i32
  }
  func.func @transform_4(%arg0: i32) -> (i32, i32) {
    %c0_i32 = arith.constant 0 : i32
    %c0_i32_0 = arith.constant 0 : i32
    %c0_i32_1 = arith.constant 0 : i32
    return %c0_i32, %c0_i32_0 : i32, i32
  }
  func.func @transform_5(%arg0: i32) -> (i32, i32) {
    %c0_i32 = arith.constant 0 : i32
    %c0_i32_0 = arith.constant 0 : i32
    %c0_i32_1 = arith.constant 0 : i32
    return %c0_i32, %c0_i32_0 : i32, i32
  }
  func.func @transform_6(%arg0: i32) -> (i32, i32) {
    %c0_i32 = arith.constant 0 : i32
    %c0_i32_0 = arith.constant 0 : i32
    %c0_i32_1 = arith.constant 0 : i32
    return %c0_i32, %c0_i32_0 : i32, i32
  }
  func.func @transform_7(%arg0: i32) -> (i32, i32) {
    %c0_i32 = arith.constant 0 : i32
    %c0_i32_0 = arith.constant 0 : i32
    %c0_i32_1 = arith.constant 0 : i32
    return %c0_i32, %c0_i32_0 : i32, i32
  }
  func.func @transform_8(%arg0: i32) -> (i32, i32) {
    %c0_i32 = arith.constant 0 : i32
    %c0_i32_0 = arith.constant 0 : i32
    %c0_i32_1 = arith.constant 0 : i32
    return %c0_i32, %c0_i32_0 : i32, i32
  }
  func.func @transform_9(%arg0: i32) -> (i32, i32) {
    %c0_i32 = arith.constant 0 : i32
    %c0_i32_0 = arith.constant 0 : i32
    return %arg0, %c0_i32 : i32, i32
  }
}

</mosaic_0001>

<llo_original>
// kernel: tpu_custom_call.1
$region0: #{tpu_custom_call.1}
  #allocation0 [shape = 'u32[]', space=smem, size = 0x4, offset = 0x4, fixed_abs, tag = 'smem constant byte address 0x4 - core index']
  #allocation1 [shape = 'u32[144,128]{1,0:T(1,128)}', space=vmem, size = 0x12000, scoped, tag = 'internal scratch']
  %s0 = inlined_call_operand.hbm [shape: bf16[8,16], index: 0, kind: input, shape index: {}]
  %s1 = inlined_call_operand.hbm [shape: bf16[16,30], index: 1, kind: input, shape index: {}]
  %s2 = inlined_call_operand.vmem [shape: f32[1,30], index: 2, kind: input, shape index: {}]
  %s3 = inlined_call_operand.vmem [shape: bf16[30,30], index: 3, kind: input, shape index: {}]
  %s4 = inlined_call_operand.vmem [shape: f32[1,30], index: 4, kind: input, shape index: {}]
  %s5 = inlined_call_operand.vmem [shape: bf16[30,30], index: 5, kind: input, shape index: {}]
  %s6 = inlined_call_operand.vmem [shape: f32[1,30], index: 6, kind: input, shape index: {}]
  %s7 = inlined_call_operand.vmem [shape: bf16[30,6], index: 7, kind: input, shape index: {}]
  %s8 = inlined_call_operand.vmem [shape: f32[1,6], index: 8, kind: input, shape index: {}]
  %s9 = inlined_call_operand.hbm [shape: f32[8,6], index: 9, kind: output, shape index: {}]
  %s10 = sld [smem:[#allocation0]]
  $region54: #{tpu_custom_call.1} parent=0
    _
  %s12 = ssub.s32 1, %s10
  %s13 = scalar_select 0, %s12, %s10
  $region1: #{tpu_custom_call.1} parent=0
    #allocation2 [shape = 'u8[2048]{0}', space=vmem, size = 0x800, scoped, tag = 'input window, operand 0, single buffered']
    #allocation3 [shape = 's32[1]{0}', space=sflag, size = 0x4, scoped, tag = 'scoped memory for tpu_custom_call.1']
    #allocation4 [shape = 's32[1]{0}', space=sflag, size = 0x4, scoped, tag = 'scoped memory for tpu_custom_call.1']
    #allocation5 [shape = 'u8[4096]{0}', space=vmem, size = 0x1000, scoped, tag = 'input window, operand 1, single buffered']
    #allocation6 [shape = 's32[1]{0}', space=sflag, size = 0x4, scoped, tag = 'scoped memory for tpu_custom_call.1']
    #allocation7 [shape = 'u8[4096]{0}', space=vmem, size = 0x1000, scoped, tag = 'output window, operand 0, single buffered']
    %14 = vsyncpa [#allocation3], 0
    %15 = vsyncpa [#allocation6], 0
    %16 = vsyncpa [#allocation4], 0
    // Predicated region
    $region2: #{tpu_custom_call.1} parent=1 // pred_check
      _
    $region3: #{tpu_custom_call.1} parent=1 // pred_check_branch
      %18 = sbr.rel (0) target = $region5
    $region4: #{tpu_custom_call.1} parent=1 // pred_region
      %s20 = ssub.s32 64, 64
      %21 = vsyncadd [#allocation3], %s20
      %s23 = sshll.u32 [#allocation2], 4
      %s24 = int_to_ptr.vmem [resolvable:$true] %s23
      %26 = dma.hbm_to_vmem [thread:$0]  %s0, 64, %s24, [#allocation3]
    $region5: #{tpu_custom_call.1} parent=1 // pred_fallthru
      _
    // Predicated region
    $region6: #{tpu_custom_call.1} parent=1 // pred_check
      _
    $region7: #{tpu_custom_call.1} parent=1 // pred_check_branch
      %28 = sbr.rel (0) target = $region9
    $region8: #{tpu_custom_call.1} parent=1 // pred_region
      %s30 = ssub.s32 128, 128
      %31 = vsyncadd [#allocation6], %s30
      %s32 = sshll.u32 [#allocation5], 4
      %s33 = int_to_ptr.vmem [resolvable:$true] %s32
      %38 = dma.hbm_to_vmem [thread:$0]  %s1, 128, %s33, [#allocation6], 64, 64, 4
    $region9: #{tpu_custom_call.1} parent=1 // pred_fallthru
      _
    // Predicated region
    $region10: #{tpu_custom_call.1} parent=1 // pred_check
      _
    $region11: #{tpu_custom_call.1} parent=1 // pred_check_branch
      %40 = sbr.rel (0) target = $region13
    $region12: #{tpu_custom_call.1} parent=1 // pred_region
      _
    $region13: #{tpu_custom_call.1} parent=1 // pred_fallthru
      _
    // Predicated region
    $region14: #{tpu_custom_call.1} parent=1 // pred_check
      _
    $region15: #{tpu_custom_call.1} parent=1 // pred_check_branch
      %42 = sbr.rel (0) target = $region17
    $region16: #{tpu_custom_call.1} parent=1 // pred_region
      _
    $region17: #{tpu_custom_call.1} parent=1 // pred_fallthru
      _
    // Predicated region
    $region18: #{tpu_custom_call.1} parent=1 // pred_check
      _
    $region19: #{tpu_custom_call.1} parent=1 // pred_check_branch
      %44 = sbr.rel (0) target = $region21
    $region20: #{tpu_custom_call.1} parent=1 // pred_region
      _
    $region21: #{tpu_custom_call.1} parent=1 // pred_fallthru
      _
    // Predicated region
    $region22: #{tpu_custom_call.1} parent=1 // pred_check
      _
    $region23: #{tpu_custom_call.1} parent=1 // pred_check_branch
      %46 = sbr.rel (0) target = $region25
    $region24: #{tpu_custom_call.1} parent=1 // pred_region
      _
    $region25: #{tpu_custom_call.1} parent=1 // pred_fallthru
      _
    // Predicated region
    $region26: #{tpu_custom_call.1} parent=1 // pred_check
      _
    $region27: #{tpu_custom_call.1} parent=1 // pred_check_branch
      %48 = sbr.rel (0) target = $region29
    $region28: #{tpu_custom_call.1} parent=1 // pred_region
      _
    $region29: #{tpu_custom_call.1} parent=1 // pred_fallthru
      _
    // Predicated region
    $region30: #{tpu_custom_call.1} parent=1 // pred_check
      _
    $region31: #{tpu_custom_call.1} parent=1 // pred_check_branch
      %50 = sbr.rel (0) target = $region33
    $region32: #{tpu_custom_call.1} parent=1 // pred_region
      _
    $region33: #{tpu_custom_call.1} parent=1 // pred_fallthru
      _
    // Predicated region
    $region34: #{tpu_custom_call.1} parent=1 // pred_check
      _
    $region35: #{tpu_custom_call.1} parent=1 // pred_check_branch
      %52 = sbr.rel (0) target = $region37
    $region36: #{tpu_custom_call.1} parent=1 // pred_region
      _
    $region37: #{tpu_custom_call.1} parent=1 // pred_fallthru
      _
    // Predicated region
    $region38: #{tpu_custom_call.1} parent=1 // pred_check
      _
    $region39: #{tpu_custom_call.1} parent=1 // pred_check_branch
      %54 = sbr.rel (0) target = $region41
    $region40: #{tpu_custom_call.1} parent=1 // pred_region
      %55 = dma.done [#allocation3], 64
    $region41: #{tpu_custom_call.1} parent=1 // pred_fallthru
      _
    // Predicated region
    $region42: #{tpu_custom_call.1} parent=1 // pred_check
      _
    $region43: #{tpu_custom_call.1} parent=1 // pred_check_branch
      %57 = sbr.rel (0) target = $region45
    $region44: #{tpu_custom_call.1} parent=1 // pred_region
      %58 = dma.done [#allocation6], 128
    $region45: #{tpu_custom_call.1} parent=1 // pred_fallthru
      _
    %v60 = vld [vmem:[#allocation2] sm:$0xf]
    %v61 = vld [vmem:[#allocation5] sm:$0xf]
    %v62 = vld [vmem:[#allocation5 + $0x4] sm:$0xf]
    %v63 = vld [vmem:[%s2] sm:$0x1]
    %v65 = vlaneseq
    %v66 = vshrl.u32 %v65, 7
    %v67 = vsub.s32 0, %v66
    %v68 = vrot.slane %v63, %v67
    %v72 = vunpack.c.l.b16 %v61
    %v73 = vunpack.c.l.b16 %v62
    %v74 = vpack.c.b16 %v73, %v72
    %vm76 = vcmask 130048
    %v78 = vsel %vm76, %v60, 0
    %80 = vmatprep.subr.bf16.mxu0 0
    %81 = vmatpush1.bf16.msra.mxu0 %v74
    %82 = vmatprep.subr.bf16.mxu0 0
    %83 = vmatpush1.bf16.msra.mxu0 0
    %84 = vmatprep.subr.bf16.mxu0 0
    %85 = vmatpush1.bf16.msra.mxu0 0
    %86 = vmatprep.subr.bf16.mxu0 0
    %87 = vmatpush1.bf16.msra.mxu0 0
    %88 = vmatprep.subr.bf16.mxu0 0
    %89 = vmatpush1.bf16.msra.mxu0 0
    %90 = vmatprep.subr.bf16.mxu0 0
    %91 = vmatpush1.bf16.msra.mxu0 0
    %92 = vmatprep.subr.bf16.mxu0 0
    %93 = vmatpush1.bf16.msra.mxu0 0
    %94 = vmatprep.subr.bf16.mxu0 0
    %95 = vmatpush1.bf16.msra.mxu0 0
    %96 = vmatprep.subr.bf16.mxu0 0
    %97 = vmatpush1.bf16.msra.mxu0 0
    %98 = vmatprep.subr.bf16.mxu0 0
    %99 = vmatpush1.bf16.msra.mxu0 0
    %100 = vmatprep.subr.bf16.mxu0 0
    %101 = vmatpush1.bf16.msra.mxu0 0
    %102 = vmatprep.subr.bf16.mxu0 0
    %103 = vmatpush1.bf16.msra.mxu0 0
    %104 = vmatprep.subr.bf16.mxu0 0
    %105 = vmatpush1.bf16.msra.mxu0 0
    %106 = vmatprep.subr.bf16.mxu0 0
    %107 = vmatpush1.bf16.msra.mxu0 0
    %108 = vmatprep.subr.bf16.mxu0 0
    %109 = vmatpush1.bf16.msra.mxu0 0
    %110 = vmatprep.subr.bf16.mxu0 0
    %111 = vmatpush1.bf16.msra.mxu0 0
    %112 = vmatprep.mubr.bf16.mxu0 0
    %113 = vmatmul.mubr.bf16.gmra.mrb[0].mxu0 %v78
    %v114 = vpop.f32.mrb[0].mxu0
    %v115 = vadd.f32 %v68, %v114
    %v116 = vpop.f32.mrb[0].mxu0
    %v117 = vpop.f32.mrb[0].mxu0
    %v118 = vpop.f32.mrb[0].mxu0
    %119 = vdwg.mxu0
    %v120 = vmax.f32 %v115, 0.0
    %v121 = vpack.c.bf16 %v120, %v120
    %v122 = vld [vmem:[%s3] sm:$0xf]
    %v123 = vld [vmem:[%s3 + $0x4] sm:$0xf]
    %v124 = vld [vmem:[%s3 + $0x8] sm:$0xf]
    %v125 = vld [vmem:[%s3 + $0xc] sm:$0x7]
    %v126 = vld [vmem:[%s4] sm:$0x1]
    %v128 = vlaneseq
    %v129 = vshrl.u32 %v128, 7
    %v130 = vsub.s32 0, %v129
    %v131 = vrot.slane %v126, %v130
    %v137 = vunpack.c.l.b16 %v122
    %v138 = vunpack.c.l.b16 %v123
    %v139 = vunpack.c.l.b16 %v124
    %v140 = vunpack.c.l.b16 %v125
    %v141 = vpack.c.b16 %v138, %v137
    %v142 = vpack.c.b16 %v140, %v139
    %vm144 = vcmask 244736
    %v146 = vsel %vm144, %v121, 0
    %vm148 = vcmask 1046528
    %v150 = vsel %vm148, %v142, 0
    %152 = vmatprep.subr.bf16.mxu0 0
    %153 = vmatpush1.bf16.msra.mxu0 %v141
    %154 = vmatprep.subr.bf16.mxu0 0
    %155 = vmatpush1.bf16.msra.mxu0 %v150
    %156 = vmatprep.subr.bf16.mxu0 0
    %157 = vmatpush1.bf16.msra.mxu0 0
    %158 = vmatprep.subr.bf16.mxu0 0
    %159 = vmatpush1.bf16.msra.mxu0 0
    %160 = vmatprep.subr.bf16.mxu0 0
    %161 = vmatpush1.bf16.msra.mxu0 0
    %162 = vmatprep.subr.bf16.mxu0 0
    %163 = vmatpush1.bf16.msra.mxu0 0
    %164 = vmatprep.subr.bf16.mxu0 0
    %165 = vmatpush1.bf16.msra.mxu0 0
    %166 = vmatprep.subr.bf16.mxu0 0
    %167 = vmatpush1.bf16.msra.mxu0 0
    %168 = vmatprep.subr.bf16.mxu0 0
    %169 = vmatpush1.bf16.msra.mxu0 0
    %170 = vmatprep.subr.bf16.mxu0 0
    %171 = vmatpush1.bf16.msra.mxu0 0
    %172 = vmatprep.subr.bf16.mxu0 0
    %173 = vmatpush1.bf16.msra.mxu0 0
    %174 = vmatprep.subr.bf16.mxu0 0
    %175 = vmatpush1.bf16.msra.mxu0 0
    %176 = vmatprep.subr.bf16.mxu0 0
    %177 = vmatpush1.bf16.msra.mxu0 0
    %178 = vmatprep.subr.bf16.mxu0 0
    %179 = vmatpush1.bf16.msra.mxu0 0
    %180 = vmatprep.subr.bf16.mxu0 0
    %181 = vmatpush1.bf16.msra.mxu0 0
    %182 = vmatprep.subr.bf16.mxu0 0
    %183 = vmatpush1.bf16.msra.mxu0 0
    %184 = vmatprep.mubr.bf16.mxu0 0
    %185 = vmatmul.mubr.bf16.gmra.mrb[0].mxu0 %v146
    %v186 = vpop.f32.mrb[0].mxu0
    %v187 = vadd.f32 %v131, %v186
    %v188 = vpop.f32.mrb[0].mxu0
    %v189 = vpop.f32.mrb[0].mxu0
    %v190 = vpop.f32.mrb[0].mxu0
    %191 = vdwg.mxu0
    %v192 = vmax.f32 %v187, 0.0
    %v193 = vpack.c.bf16 %v192, %v192
    %v194 = vld [vmem:[%s5] sm:$0xf]
    %v195 = vld [vmem:[%s5 + $0x4] sm:$0xf]
    %v196 = vld [vmem:[%s5 + $0x8] sm:$0xf]
    %v197 = vld [vmem:[%s5 + $0xc] sm:$0x7]
    %v198 = vld [vmem:[%s6] sm:$0x1]
    %v200 = vlaneseq
    %v201 = vshrl.u32 %v200, 7
    %v202 = vsub.s32 0, %v201
    %v203 = vrot.slane %v198, %v202
    %v209 = vunpack.c.l.b16 %v194
    %v210 = vunpack.c.l.b16 %v195
    %v211 = vunpack.c.l.b16 %v196
    %v212 = vunpack.c.l.b16 %v197
    %v213 = vpack.c.b16 %v210, %v209
    %v214 = vpack.c.b16 %v212, %v211
    %v217 = vsel %vm144, %v193, 0
    %v220 = vsel %vm148, %v214, 0
    %222 = vmatprep.subr.bf16.mxu0 0
    %223 = vmatpush1.bf16.msra.mxu0 %v213
    %224 = vmatprep.subr.bf16.mxu0 0
    %225 = vmatpush1.bf16.msra.mxu0 %v220
    %226 = vmatprep.subr.bf16.mxu0 0
    %227 = vmatpush1.bf16.msra.mxu0 0
    %228 = vmatprep.subr.bf16.mxu0 0
    %229 = vmatpush1.bf16.msra.mxu0 0
    %230 = vmatprep.subr.bf16.mxu0 0
    %231 = vmatpush1.bf16.msra.mxu0 0
    %232 = vmatprep.subr.bf16.mxu0 0
    %233 = vmatpush1.bf16.msra.mxu0 0
    %234 = vmatprep.subr.bf16.mxu0 0
    %235 = vmatpush1.bf16.msra.mxu0 0
    %236 = vmatprep.subr.bf16.mxu0 0
    %237 = vmatpush1.bf16.msra.mxu0 0
    %238 = vmatprep.subr.bf16.mxu0 0
    %239 = vmatpush1.bf16.msra.mxu0 0
    %240 = vmatprep.subr.bf16.mxu0 0
    %241 = vmatpush1.bf16.msra.mxu0 0
    %242 = vmatprep.subr.bf16.mxu0 0
    %243 = vmatpush1.bf16.msra.mxu0 0
    %244 = vmatprep.subr.bf16.mxu0 0
    %245 = vmatpush1.bf16.msra.mxu0 0
    %246 = vmatprep.subr.bf16.mxu0 0
    %247 = vmatpush1.bf16.msra.mxu0 0
    %248 = vmatprep.subr.bf16.mxu0 0
    %249 = vmatpush1.bf16.msra.mxu0 0
    %250 = vmatprep.subr.bf16.mxu0 0
    %251 = vmatpush1.bf16.msra.mxu0 0
    %252 = vmatprep.subr.bf16.mxu0 0
    %253 = vmatpush1.bf16.msra.mxu0 0
    %254 = vmatprep.mubr.bf16.mxu0 0
    %255 = vmatmul.mubr.bf16.gmra.mrb[0].mxu0 %v217
    %v256 = vpop.f32.mrb[0].mxu0
    %v257 = vadd.f32 %v203, %v256
    %v258 = vpop.f32.mrb[0].mxu0
    %v259 = vpop.f32.mrb[0].mxu0
    %v260 = vpop.f32.mrb[0].mxu0
    %261 = vdwg.mxu0
    %v262 = vmax.f32 %v257, 0.0
    %v263 = vpack.c.bf16 %v262, %v262
    %v264 = vld [vmem:[%s7] sm:$0xf]
    %v265 = vld [vmem:[%s7 + $0x4] sm:$0xf]
    %v266 = vld [vmem:[%s7 + $0x8] sm:$0xf]
    %v267 = vld [vmem:[%s7 + $0xc] sm:$0x7]
    %v268 = vld [vmem:[%s8] sm:$0x1]
    %v270 = vlaneseq
    %v271 = vshrl.u32 %v270, 7
    %v272 = vsub.s32 0, %v271
    %v273 = vrot.slane %v268, %v272
    %v279 = vunpack.c.l.b16 %v264
    %v280 = vunpack.c.l.b16 %v265
    %v281 = vunpack.c.l.b16 %v266
    %v282 = vunpack.c.l.b16 %v267
    %v283 = vpack.c.b16 %v280, %v279
    %v284 = vpack.c.b16 %v282, %v281
    %v287 = vsel %vm144, %v263, 0
    %v290 = vsel %vm148, %v284, 0
    %292 = vmatprep.subr.bf16.mxu0 0
    %293 = vmatpush1.bf16.msra.mxu0 %v283
    %294 = vmatprep.subr.bf16.mxu0 0
    %295 = vmatpush1.bf16.msra.mxu0 %v290
    %296 = vmatprep.subr.bf16.mxu0 0
    %297 = vmatpush1.bf16.msra.mxu0 0
    %298 = vmatprep.subr.bf16.mxu0 0
    %299 = vmatpush1.bf16.msra.mxu0 0
    %300 = vmatprep.subr.bf16.mxu0 0
    %301 = vmatpush1.bf16.msra.mxu0 0
    %302 = vmatprep.subr.bf16.mxu0 0
    %303 = vmatpush1.bf16.msra.mxu0 0
    %304 = vmatprep.subr.bf16.mxu0 0
    %305 = vmatpush1.bf16.msra.mxu0 0
    %306 = vmatprep.subr.bf16.mxu0 0
    %307 = vmatpush1.bf16.msra.mxu0 0
    %308 = vmatprep.subr.bf16.mxu0 0
    %309 = vmatpush1.bf16.msra.mxu0 0
    %310 = vmatprep.subr.bf16.mxu0 0
    %311 = vmatpush1.bf16.msra.mxu0 0
    %312 = vmatprep.subr.bf16.mxu0 0
    %313 = vmatpush1.bf16.msra.mxu0 0
    %314 = vmatprep.subr.bf16.mxu0 0
    %315 = vmatpush1.bf16.msra.mxu0 0
    %316 = vmatprep.subr.bf16.mxu0 0
    %317 = vmatpush1.bf16.msra.mxu0 0
    %318 = vmatprep.subr.bf16.mxu0 0
    %319 = vmatpush1.bf16.msra.mxu0 0
    %320 = vmatprep.subr.bf16.mxu0 0
    %321 = vmatpush1.bf16.msra.mxu0 0
    %322 = vmatprep.subr.bf16.mxu0 0
    %323 = vmatpush1.bf16.msra.mxu0 0
    %324 = vmatprep.mubr.bf16.mxu0 0
    %325 = vmatmul.mubr.bf16.gmra.mrb[0].mxu0 %v287
    %v326 = vpop.f32.mrb[0].mxu0
    %v327 = vadd.f32 %v273, %v326
    %v328 = vpop.f32.mrb[0].mxu0
    %v329 = vpop.f32.mrb[0].mxu0
    %v330 = vpop.f32.mrb[0].mxu0
    %331 = vdwg.mxu0
    %v332 = vsub.f32 0.0, %v327
    %v333 = vmul.f32 %v332, 1.442695
    %v334 = vpow.pop %v333
    %v335 = vadd.f32 %v334, 1.0
    %v336 = vrcp.pop %v335
    %vm337 = vcmask 48128
    %338 = vst.msk [vmem:[#allocation7] sm:$0xff] %vm337, %v336
    // Predicated region
    $region46: #{tpu_custom_call.1} parent=1 // pred_check
      _
    $region47: #{tpu_custom_call.1} parent=1 // pred_check_branch
      %340 = sbr.rel (0) target = $region49
    $region48: #{tpu_custom_call.1} parent=1 // pred_region
      %s342 = ssub.s32 128, 128
      %343 = vsyncadd [#allocation4], %s342
      %s345 = sshll.u32 [#allocation7], 4
      %s346 = int_to_ptr.vmem [resolvable:$true] %s345
      %348 = dma.vmem_to_hbm [thread:$0]  %s346, 128, %s9, [#allocation4]
    $region49: #{tpu_custom_call.1} parent=1 // pred_fallthru
      _
    // Predicated region
    $region50: #{tpu_custom_call.1} parent=1 // pred_check
      _
    $region51: #{tpu_custom_call.1} parent=1 // pred_check_branch
      %350 = sbr.rel (0) target = $region53
    $region52: #{tpu_custom_call.1} parent=1 // pred_region
      %351 = dma.done [#allocation4], 128
    $region53: #{tpu_custom_call.1} parent=1 // pred_fallthru
      _
    %352 = vsyncpa [#allocation3], 1
    %353 = vsyncpa [#allocation6], 1
    %354 = vsyncpa [#allocation4], 1

</llo_original>
